<compile_context>
chip_gen: v7x
topology: tpu7x:2x2x1
jax: 0.10.0
libtpu: 0.0.40
codegen_flags: <defaults>
</compile_context>

<pallas_src>
import functools

import jax
import jax.numpy as jnp
from jax.experimental import pallas as pl
from jax.experimental.pallas import tpu as pltpu

_LANE = 128
_SUBLANE = 8
_VMEM_TILE_BUDGET = 16 * 1024 * 1024   # per-step working set (dbl-buffered inputs + body temps)
_VMEM_LIMIT = 40 * 1024 * 1024         # scoped-VMEM limit; safe on v7x's 64 MiB physical VMEM
_MAX_SPATIAL_TILE = 32 * 1024          # TD cap: per-step overhead already <10-15% at this size
_MAX_ROW_TILE = 4096                   # raised from 1024 (budget already covers lane padding)
_MIN_LANE_C = 128                      # below this, (N, C) goes through the sublane kernel


def _ceil_to(x, m):
    return ((x + m - 1) // m) * m


def _focal_term(one_minus_pt, gamma):
    """(1 - pt) ** gamma.  Integer gamma -> VPU multiplies; else EUP exp/log."""
    if gamma == 0.0:
        return jnp.ones_like(one_minus_pt)
    g = float(gamma)
    if g.is_integer() and 1.0 <= g <= 8.0:
        out = one_minus_pt
        for _ in range(int(g) - 1):
            out = out * one_minus_pt
        return out
    # Non-integer gamma: exp/log on the EUP.  The clamp keeps the log finite, so at
    # pt == 1 this returns a tiny positive value instead of exactly 0 (negligible).
    return jnp.exp(g * jnp.log(jnp.maximum(one_minus_pt, 1e-38)))


# ----------------------------------------------------------------------------
# Kernel A: classes on the sublane axis, positions on the 128-lane axis.
# Used for ndim > 2 inputs (viewed as (B, C, D)) and for small-C (N, C) inputs
# (wrapper-transposed to (1, C, N)).  One (1,1,1) partial (sum, count) per step.
# ----------------------------------------------------------------------------
def _focal_kernel_csub(x_ref, y_ref, alpha_ref, sum_ref, cnt_ref,
                       *, gamma, ignore_index, d_total, td):
    j = pl.program_id(1)

    x = x_ref[0].astype(jnp.float32)             # (C, TD) logits, native dtype in HBM
    y = y_ref[0]                                 # (1, TD) int32 labels
    alpha = alpha_ref[...].astype(jnp.float32)   # (C, 1) class weights (resident)

    # Softmax statistics over the class (sublane) axis.
    m = jnp.max(x, axis=0, keepdims=True)        # (1, TD)
    s = x - m
    es = jnp.exp(s)                              # single (C, TD) EUP pass
    sumexp = jnp.sum(es, axis=0, keepdims=True)  # (1, TD)
    log_sumexp = jnp.log(sumexp)                 # (1, TD)

    # Gather s_t / exp(s_t) / alpha_t via a one-hot mask (no dynamic gather on TPU).
    cls = jax.lax.broadcasted_iota(jnp.int32, x.shape, 0)
    onehot = (cls == y).astype(jnp.float32)                      # (C, TD)
    s_t = jnp.sum(s * onehot, axis=0, keepdims=True)             # (1, TD)
    es_t = jnp.sum(es * onehot, axis=0, keepdims=True)           # (1, TD)
    alpha_y = jnp.sum(alpha * onehot, axis=0, keepdims=True)     # (1, TD)

    log_pt = s_t - log_sumexp                    # log-softmax at the label class
    ce = -alpha_y * log_pt                       # NLLLoss(weight=alpha, reduction='none')
    # 1 - pt without an extra exp pass: pt = exp(s_t)/sumexp (exact division keeps 1e-5 tol).
    one_minus_pt = jnp.maximum(sumexp - es_t, 0.0) / sumexp
    focal = _focal_term(one_minus_pt, gamma)

    # In-kernel remainder / ignore_index masking (no padding of x / y in the wrapper).
    pos = jax.lax.broadcasted_iota(jnp.int32, (1, td), 1) + j * td
    valid = (pos < d_total) & (y != ignore_index)
    loss = jnp.where(valid, focal * ce, 0.0)

    sum_ref[...] = jnp.sum(loss).reshape(1, 1, 1)
    cnt_ref[...] = jnp.sum(valid.astype(jnp.float32)).reshape(1, 1, 1)


# ----------------------------------------------------------------------------
# Kernel B: rows on sublanes, classes on lanes.  Large-C (C >= 128) fallback only.
# ----------------------------------------------------------------------------
def _focal_kernel_clane(x_ref, y_ref, alpha_ref, sum_ref, cnt_ref,
                        *, gamma, ignore_index, n_total, tm):
    i = pl.program_id(0)

    x = x_ref[...].astype(jnp.float32)           # (TM, C)
    y = y_ref[...]                               # (TM, 1) int32
    alpha = alpha_ref[...].astype(jnp.float32)   # (1, C)

    m = jnp.max(x, axis=-1, keepdims=True)
    s = x - m
    es = jnp.exp(s)
    sumexp = jnp.sum(es, axis=-1, keepdims=True)
    log_sumexp = jnp.log(sumexp)

    cls = jax.lax.broadcasted_iota(jnp.int32, x.shape, 1)
    onehot = (cls == y).astype(jnp.float32)
    s_t = jnp.sum(s * onehot, axis=-1, keepdims=True)
    es_t = jnp.sum(es * onehot, axis=-1, keepdims=True)
    alpha_y = jnp.sum(alpha * onehot, axis=-1, keepdims=True)

    log_pt = s_t - log_sumexp
    ce = -alpha_y * log_pt
    one_minus_pt = jnp.maximum(sumexp - es_t, 0.0) / sumexp
    focal = _focal_term(one_minus_pt, gamma)

    row = jax.lax.broadcasted_iota(jnp.int32, (tm, 1), 0) + i * tm
    valid = (row < n_total) & (y != ignore_index)
    loss = jnp.where(valid, focal * ce, 0.0)

    # Single (1,1,1) partial per step: no lane-padded (TM,1) accumulator read-modify-write,
    # and the row axis can stay "parallel" (v7x 2-TC sharding of the 2D path).
    sum_ref[...] = jnp.sum(loss).reshape(1, 1, 1)
    cnt_ref[...] = jnp.sum(valid.astype(jnp.float32)).reshape(1, 1, 1)


# ----------------------------------------------------------------------------
# Tile selection (VMEM-budget driven, including block-sized body intermediates).
# ----------------------------------------------------------------------------
def _spatial_tile(d, c, itemsize):
    c_pad = _ceil_to(max(c, 1), _SUBLANE)
    # Double-buffered logits + labels, plus ~6 live (C, TD) f32 body temporaries
    # (x_f32, s, es, onehot, products) and ~8 sublane-padded (1, TD) f32 temps.
    per_lane = (2 * c_pad * itemsize
                + 2 * _SUBLANE * 4
                + 6 * c_pad * 4
                + 8 * _SUBLANE * 4)
    td = max(_LANE, (_VMEM_TILE_BUDGET // per_lane) // _LANE * _LANE)
    td = min(td, _MAX_SPATIAL_TILE)
    if d <= td:
        return d            # whole spatial extent in one block (full-dim block is allowed)
    return td               # multiple of 128


def _row_tile(n, c, itemsize):
    c_pad = _ceil_to(c, _LANE)
    per_row = (2 * c_pad * itemsize
               + 2 * _LANE * 4
               + 6 * c_pad * 4
               + 8 * _LANE * 4)
    tm = max(_SUBLANE, (_VMEM_TILE_BUDGET // per_row) // _SUBLANE * _SUBLANE)
    tm = min(tm, _MAX_ROW_TILE)
    if n <= tm:
        return n
    return tm


# ----------------------------------------------------------------------------
# pallas_call wrappers
# ----------------------------------------------------------------------------
def _focal_sums_csub(x3, y3, alpha_col, gamma, ignore_index):
    """(B, C, D) layout -> (loss_sum, count) via per-(batch, spatial-tile) partials."""
    b, c, d = x3.shape
    td = _spatial_tile(d, c, x3.dtype.itemsize)
    nt = pl.cdiv(d, td)
    kernel = functools.partial(_focal_kernel_csub, gamma=float(gamma),
                               ignore_index=int(ignore_index), d_total=d, td=td)

    sums, cnts = pl.pallas_call(
        kernel,
        out_shape=(jax.ShapeDtypeStruct((b * nt, 1, 1), jnp.float32),
                   jax.ShapeDtypeStruct((b * nt, 1, 1), jnp.float32)),
        grid_spec=pltpu.PrefetchScalarGridSpec(
            num_scalar_prefetch=0,
            grid=(b, nt),
            in_specs=[
                pl.BlockSpec((1, c, td), lambda i, j: (i, 0, j)),   # logits tile (native dtype)
                pl.BlockSpec((1, 1, td), lambda i, j: (i, 0, j)),   # labels tile
                pl.BlockSpec((c, 1), lambda i, j: (0, 0)),          # alpha (resident)
            ],
            out_specs=(
                pl.BlockSpec((1, 1, 1), lambda i, j: (i * nt + j, 0, 0)),  # per-step loss partial
                pl.BlockSpec((1, 1, 1), lambda i, j: (i * nt + j, 0, 0)),  # per-step count partial
            ),
        ),
        compiler_params=pltpu.CompilerParams(
            dimension_semantics=("parallel", "parallel"),   # both axes shardable across v7x TCs
            vmem_limit_bytes=_VMEM_LIMIT),
    )(x3, y3, alpha_col)
    return jnp.sum(sums), jnp.sum(cnts)


def _focal_sums_clane(x, y2, alpha_row, gamma, ignore_index):
    """(N, C) with large C: rows on sublanes, classes on lanes, per-row-tile partials."""
    n, c = x.shape
    tm = _row_tile(n, c, x.dtype.itemsize)
    nt = pl.cdiv(n, tm)
    kernel = functools.partial(_focal_kernel_clane, gamma=float(gamma),
                               ignore_index=int(ignore_index), n_total=n, tm=tm)

    sums, cnts = pl.pallas_call(
        kernel,
        out_shape=(jax.ShapeDtypeStruct((nt, 1, 1), jnp.float32),
                   jax.ShapeDtypeStruct((nt, 1, 1), jnp.float32)),
        grid_spec=pltpu.PrefetchScalarGridSpec(
            num_scalar_prefetch=0,
            grid=(nt,),
            in_specs=[
                pl.BlockSpec((tm, c), lambda i: (i, 0)),    # logits tile (native dtype)
                pl.BlockSpec((tm, 1), lambda i: (i, 0)),    # labels tile
                pl.BlockSpec((1, c), lambda i: (0, 0)),     # alpha (resident)
            ],
            out_specs=(
                pl.BlockSpec((1, 1, 1), lambda i: (i, 0, 0)),
                pl.BlockSpec((1, 1, 1), lambda i: (i, 0, 0)),
            ),
        ),
        compiler_params=pltpu.CompilerParams(
            dimension_semantics=("parallel",),
            vmem_limit_bytes=_VMEM_LIMIT),
    )(x, y2, alpha_row)
    return jnp.sum(sums), jnp.sum(cnts)


def focal_loss(x, y, alpha=None, gamma=0.0, reduction="mean", ignore_index=-100):
    """JAX/Pallas equivalent of FocalLoss.forward (reduction 'mean' / 'sum')."""
    if reduction not in ("mean", "sum", "none"):
        raise ValueError('Reduction must be one of: "mean", "sum", "none".')
    orig_dtype = x.dtype
    c = x.shape[1]
    if alpha is None:
        alpha_f = jnp.ones((c,), jnp.float32)
    else:
        alpha_f = jnp.asarray(alpha, jnp.float32).reshape(c)

    if x.ndim > 2:
        b = x.shape[0]
        d = 1
        for s in x.shape[2:]:
            d *= int(s)
        x3 = x.reshape(b, c, d)                      # contiguous view: no transpose/cast/pad
        y3 = jnp.asarray(y, jnp.int32).reshape(b, 1, d)
        loss_sum, cnt = _focal_sums_csub(x3, y3, alpha_f.reshape(c, 1), gamma, ignore_index)
    elif c < _MIN_LANE_C:
        # Small C: one wrapper transpose to (C, N) keeps the classes on the sublane
        # axis and the positions lane-dense (avoids ~C_pad/C wasted EUP/VPU work).
        n = x.shape[0]
        x3 = x.T.reshape(1, c, n)
        y3 = jnp.asarray(y, jnp.int32).reshape(1, 1, n)
        loss_sum, cnt = _focal_sums_csub(x3, y3, alpha_f.reshape(c, 1), gamma, ignore_index)
    else:
        y2 = jnp.asarray(y, jnp.int32).reshape(x.shape[0], 1)
        loss_sum, cnt = _focal_sums_clane(x, y2, alpha_f.reshape(1, c), gamma, ignore_index)

    if reduction == "mean":
        # Matches the torch module: ignored rows are dropped, then .mean() over the
        # remaining (alpha-weighted) losses with an UNWEIGHTED denominator; 0.0 if
        # every position is ignored.
        out = jnp.where(cnt > 0, loss_sum / jnp.maximum(cnt, 1.0), 0.0)
    elif reduction == "sum":
        out = loss_sum
    else:
        # TODO(synk): reduction='none' returns a variable-length per-row vector (after
        # dropping ignore_index rows) and has no fixed-shape kernel output here.
        raise NotImplementedError("reduction='none' not supported in this kernel")
    return out.astype(orig_dtype)


def _focal_loss_ref(x, y, alpha, gamma, ignore_index):
    """Pure-JAX reference mirroring the PyTorch module (mean reduction)."""
    c = x.shape[1]
    if x.ndim > 2:
        x = jnp.moveaxis(x, 1, -1).reshape(-1, c)
        y = y.reshape(-1)
    mask = (y != ignore_index).astype(jnp.float32)
    y_c = jnp.clip(y, 0, c - 1)
    log_p = jax.nn.log_softmax(x.astype(jnp.float32), axis=-1)
    log_pt = jnp.take_along_axis(log_p, y_c[:, None], axis=-1)[:, 0]
    ce = -alpha[y_c] * log_pt
    pt = jnp.exp(log_pt)
    focal = (1.0 - pt) ** gamma
    loss = focal * ce * mask
    return jnp.sum(loss) / jnp.maximum(jnp.sum(mask), 1.0)


if __name__ == "__main__":
    key = jax.random.PRNGKey(0)
    (kx, ky, ka, km, kx2, ky2, km2, kx3, ky3, ka3, km3) = jax.random.split(key, 11)

    ignore_index = -100

    # --- 4D (NCHW) segmentation-style case: small C on sublanes, spatial on lanes.
    B, C, H, W = 2, 4, 16, 16
    gamma = 2.0
    x = jax.random.normal(kx, (B, C, H, W), dtype=jnp.float32)       # NCHW logits
    y = jax.random.randint(ky, (B, H, W), 0, C, dtype=jnp.int32)     # class labels
    ign = jax.random.bernoulli(km, 0.2, (B, H, W))                   # sprinkle ignored positions
    y = jnp.where(ign, ignore_index, y)
    alpha = jax.random.uniform(ka, (C,), jnp.float32, 0.5, 1.5)      # class weights

    out = focal_loss(x, y, alpha=alpha, gamma=gamma,
                     reduction="mean", ignore_index=ignore_index)
    out = jax.block_until_ready(out)
    ref = _focal_loss_ref(x, y, alpha, gamma, ignore_index)
    assert jnp.allclose(out, ref, rtol=1e-5, atol=1e-5), (out, ref)

    # --- 2D (N, C), small C (rerouted through the sublane kernel), non-integer gamma.
    N2, C2 = 37, 10
    gamma2 = 1.5
    x2 = jax.random.normal(kx2, (N2, C2), dtype=jnp.float32)
    y2 = jax.random.randint(ky2, (N2,), 0, C2, dtype=jnp.int32)
    ign2 = jax.random.bernoulli(km2, 0.15, (N2,))
    y2 = jnp.where(ign2, ignore_index, y2)

    out2 = focal_loss(x2, y2, alpha=None, gamma=gamma2,
                      reduction="mean", ignore_index=ignore_index)
    out2 = jax.block_until_ready(out2)
    ref2 = _focal_loss_ref(x2, y2, jnp.ones((C2,), jnp.float32), gamma2, ignore_index)
    assert jnp.allclose(out2, ref2, rtol=1e-5, atol=1e-5), (out2, ref2)

    # --- 2D (N, C), large C: classes-on-lanes fallback path.
    N3, C3 = 40, 256
    gamma3 = 2.0
    x3 = jax.random.normal(kx3, (N3, C3), dtype=jnp.float32)
    y3 = jax.random.randint(ky3, (N3,), 0, C3, dtype=jnp.int32)
    ign3 = jax.random.bernoulli(km3, 0.1, (N3,))
    y3 = jnp.where(ign3, ignore_index, y3)
    alpha3 = jax.random.uniform(ka3, (C3,), jnp.float32, 0.5, 1.5)

    out3 = focal_loss(x3, y3, alpha=alpha3, gamma=gamma3,
                      reduction="mean", ignore_index=ignore_index)
    out3 = jax.block_until_ready(out3)
    ref3 = _focal_loss_ref(x3, y3, alpha3, gamma3, ignore_index)
    assert jnp.allclose(out3, ref3, rtol=1e-5, atol=1e-5), (out3, ref3)

    print("KERNEL_OK")
</pallas_src>

<mosaic_0001>
module attributes {stable_mosaic.version = 11 : i64} {
  func.func @_focal_kernel_csub(%arg0: i32, %arg1: i32, %arg2: memref<1x4x256xf32, #tpu.memory_space<vmem>>, %arg3: memref<1x1x256xi32, #tpu.memory_space<vmem>>, %arg4: memref<4x1xf32, #tpu.memory_space<vmem>>, %arg5: memref<1x1x1xf32, #tpu.memory_space<vmem>>, %arg6: memref<1x1x1xf32, #tpu.memory_space<vmem>>) attributes {dimension_semantics = [#tpu.dimension_semantics<parallel>, #tpu.dimension_semantics<parallel>], iteration_bounds = array<i64: 2, 1>, scalar_prefetch = 0 : i64, scratch_operands = 0 : i64, tpu.core_type = #tpu.core_type<tc>, window_params = [{transform_indices = @transform_0, window_bounds = array<i64: 1, 4, 256>}, {transform_indices = @transform_1, window_bounds = array<i64: 1, 1, 256>}, {pipeline_mode = #tpu.pipeline_mode<synchronous>, transform_indices = @transform_2, window_bounds = array<i64: 4, 1>}, {transform_indices = @transform_3, window_bounds = array<i64: 1, 1, 1>}, {transform_indices = @transform_4, window_bounds = array<i64: 1, 1, 1>}]} {
    %c0 = arith.constant 0 : index
    %c0_0 = arith.constant 0 : index
    %c0_1 = arith.constant 0 : index
    %0 = vector.load %arg2[%c0, %c0_0, %c0_1] : memref<1x4x256xf32, #tpu.memory_space<vmem>>, vector<1x4x256xf32>
    %1 = vector.shape_cast %0 : vector<1x4x256xf32> to vector<4x256xf32>
    %c0_2 = arith.constant 0 : index
    %c0_3 = arith.constant 0 : index
    %c0_4 = arith.constant 0 : index
    %2 = vector.load %arg3[%c0_2, %c0_3, %c0_4] : memref<1x1x256xi32, #tpu.memory_space<vmem>>, vector<1x1x256xi32>
    %3 = vector.shape_cast %2 : vector<1x1x256xi32> to vector<1x256xi32>
    %c0_5 = arith.constant 0 : index
    %c0_6 = arith.constant 0 : index
    %4 = vector.load %arg4[%c0_5, %c0_6] : memref<4x1xf32, #tpu.memory_space<vmem>>, vector<4x1xf32>
    %cst = arith.constant dense<0xFF800000> : vector<256xf32>
    %5 = vector.multi_reduction <maximumf>, %1, %cst [0] : vector<4x256xf32> to vector<256xf32>
    %6 = vector.shape_cast %5 : vector<256xf32> to vector<1x256xf32>
    %7 = vector.broadcast %6 : vector<1x256xf32> to vector<4x256xf32>
    %8 = arith.subf %1, %7 : vector<4x256xf32>
    %9 = math.exp %8 : vector<4x256xf32>
    %cst_7 = arith.constant dense<0.000000e+00> : vector<256xf32>
    %10 = vector.multi_reduction <add>, %9, %cst_7 [0] : vector<4x256xf32> to vector<256xf32>
    %11 = vector.shape_cast %10 : vector<256xf32> to vector<1x256xf32>
    %12 = math.log %11 : vector<1x256xf32>
    %13 = tpu.iota {dimensions = array<i32: 0>} : vector<4x256xi32>
    %14 = vector.broadcast %3 : vector<1x256xi32> to vector<4x256xi32>
    %15 = arith.cmpi eq, %13, %14 : vector<4x256xi32>
    %16 = arith.extui %15 : vector<4x256xi1> to vector<4x256xi32>
    %17 = arith.sitofp %16 : vector<4x256xi32> to vector<4x256xf32>
    %18 = arith.mulf %8, %17 : vector<4x256xf32>
    %cst_8 = arith.constant dense<0.000000e+00> : vector<256xf32>
    %19 = vector.multi_reduction <add>, %18, %cst_8 [0] : vector<4x256xf32> to vector<256xf32>
    %20 = vector.shape_cast %19 : vector<256xf32> to vector<1x256xf32>
    %21 = arith.mulf %9, %17 : vector<4x256xf32>
    %cst_9 = arith.constant dense<0.000000e+00> : vector<256xf32>
    %22 = vector.multi_reduction <add>, %21, %cst_9 [0] : vector<4x256xf32> to vector<256xf32>
    %23 = vector.shape_cast %22 : vector<256xf32> to vector<1x256xf32>
    %24 = vector.broadcast %4 : vector<4x1xf32> to vector<4x256xf32>
    %25 = arith.mulf %24, %17 : vector<4x256xf32>
    %cst_10 = arith.constant dense<0.000000e+00> : vector<256xf32>
    %26 = vector.multi_reduction <add>, %25, %cst_10 [0] : vector<4x256xf32> to vector<256xf32>
    %27 = vector.shape_cast %26 : vector<256xf32> to vector<1x256xf32>
    %28 = arith.subf %20, %12 : vector<1x256xf32>
    %cst_11 = arith.constant 0.000000e+00 : f32
    %29 = vector.broadcast %cst_11 : f32 to vector<1x256xf32>
    %30 = arith.subf %29, %27 : vector<1x256xf32>
    %31 = arith.mulf %30, %28 : vector<1x256xf32>
    %32 = arith.subf %11, %23 : vector<1x256xf32>
    %cst_12 = arith.constant 0.000000e+00 : f32
    %33 = vector.broadcast %cst_12 : f32 to vector<1x256xf32>
    %34 = arith.maximumf %32, %33 : vector<1x256xf32>
    %35 = arith.divf %34, %11 : vector<1x256xf32>
    %36 = arith.mulf %35, %35 : vector<1x256xf32>
    %37 = tpu.iota {dimensions = array<i32: 1>} : vector<1x256xi32>
    %c256_i32 = arith.constant 256 : i32
    %38 = arith.muli %arg1, %c256_i32 : i32
    %39 = vector.broadcast %38 : i32 to vector<1x256xi32>
    %40 = arith.addi %37, %39 : vector<1x256xi32>
    %c256_i32_13 = arith.constant 256 : i32
    %41 = vector.broadcast %c256_i32_13 : i32 to vector<1x256xi32>
    %42 = arith.cmpi slt, %40, %41 : vector<1x256xi32>
    %c-100_i32 = arith.constant -100 : i32
    %43 = vector.broadcast %c-100_i32 : i32 to vector<1x256xi32>
    %44 = arith.cmpi ne, %3, %43 : vector<1x256xi32>
    %45 = arith.andi %42, %44 : vector<1x256xi1>
    %46 = arith.mulf %36, %31 : vector<1x256xf32>
    %cst_14 = arith.constant 0.000000e+00 : f32
    %47 = vector.broadcast %cst_14 : f32 to vector<1x256xf32>
    %48 = arith.select %45, %46, %47 : vector<1x256xi1>, vector<1x256xf32>
    %49 = vector.shape_cast %48 : vector<1x256xf32> to vector<1x1x256xf32>
    %cst_15 = arith.constant dense<0.000000e+00> : vector<1xf32>
    %50 = vector.multi_reduction <add>, %49, %cst_15 [1, 2] : vector<1x1x256xf32> to vector<1xf32>
    %51 = vector.shape_cast %50 : vector<1xf32> to vector<1x1x1xf32>
    %52 = vector.extract %51[0, 0, 0] : f32 from vector<1x1x1xf32>
    %53 = vector.broadcast %52 : f32 to vector<1x1x1xf32>
    %c0_16 = arith.constant 0 : index
    %c0_17 = arith.constant 0 : index
    %c0_18 = arith.constant 0 : index
    %54 = vector.load %arg5[%c0_16, %c0_17, %c0_18] : memref<1x1x1xf32, #tpu.memory_space<vmem>>, vector<1x1x1xf32>
    tpu.vector_store %arg5[%c0_16, %c0_17, %c0_18], %53 {strides = array<i32>} : memref<1x1x1xf32, #tpu.memory_space<vmem>>, vector<1x1x1xf32>,
    %55 = arith.extui %45 : vector<1x256xi1> to vector<1x256xi32>
    %56 = arith.sitofp %55 : vector<1x256xi32> to vector<1x256xf32>
    %57 = vector.shape_cast %56 : vector<1x256xf32> to vector<1x1x256xf32>
    %cst_19 = arith.constant dense<0.000000e+00> : vector<1xf32>
    %58 = vector.multi_reduction <add>, %57, %cst_19 [1, 2] : vector<1x1x256xf32> to vector<1xf32>
    %59 = vector.shape_cast %58 : vector<1xf32> to vector<1x1x1xf32>
    %60 = vector.extract %59[0, 0, 0] : f32 from vector<1x1x1xf32>
    %61 = vector.broadcast %60 : f32 to vector<1x1x1xf32>
    %c0_20 = arith.constant 0 : index
    %c0_21 = arith.constant 0 : index
    %c0_22 = arith.constant 0 : index
    %62 = vector.load %arg6[%c0_20, %c0_21, %c0_22] : memref<1x1x1xf32, #tpu.memory_space<vmem>>, vector<1x1x1xf32>
    tpu.vector_store %arg6[%c0_20, %c0_21, %c0_22], %61 {strides = array<i32>} : memref<1x1x1xf32, #tpu.memory_space<vmem>>, vector<1x1x1xf32>,
    return
  }
  func.func @transform_0(%arg0: i32, %arg1: i32) -> (i32, i32, i32) {
    %c0_i32 = arith.constant 0 : i32
    %c0_i32_0 = arith.constant 0 : i32
    return %arg0, %c0_i32, %arg1 : i32, i32, i32
  }
  func.func @transform_1(%arg0: i32, %arg1: i32) -> (i32, i32, i32) {
    %c0_i32 = arith.constant 0 : i32
    %c0_i32_0 = arith.constant 0 : i32
    return %arg0, %c0_i32, %arg1 : i32, i32, i32
  }
  func.func @transform_2(%arg0: i32, %arg1: i32) -> (i32, i32) {
    %c0_i32 = arith.constant 0 : i32
    %c0_i32_0 = arith.constant 0 : i32
    %c0_i32_1 = arith.constant 0 : i32
    return %c0_i32, %c0_i32_0 : i32, i32
  }
  func.func @transform_3(%arg0: i32, %arg1: i32) -> (i32, i32, i32) {
    %c1_i32 = arith.constant 1 : i32
    %0 = arith.muli %arg0, %c1_i32 : i32
    %1 = arith.addi %0, %arg1 : i32
    %c0_i32 = arith.constant 0 : i32
    %c0_i32_0 = arith.constant 0 : i32
    %c0_i32_1 = arith.constant 0 : i32
    return %1, %c0_i32, %c0_i32_0 : i32, i32, i32
  }
  func.func @transform_4(%arg0: i32, %arg1: i32) -> (i32, i32, i32) {
    %c1_i32 = arith.constant 1 : i32
    %0 = arith.muli %arg0, %c1_i32 : i32
    %1 = arith.addi %0, %arg1 : i32
    %c0_i32 = arith.constant 0 : i32
    %c0_i32_0 = arith.constant 0 : i32
    %c0_i32_1 = arith.constant 0 : i32
    return %1, %c0_i32, %c0_i32_0 : i32, i32, i32
  }
}

</mosaic_0001>

<llo_original>
// kernel: tpu_custom_call.1
$region0: #{tpu_custom_call.1}
  #allocation0 [shape = 'u32[]', space=smem, size = 0x4, offset = 0x4, fixed_abs, tag = 'smem constant byte address 0x4 - core index']
  #allocation1 [shape = 'u32[144,128]{1,0:T(1,128)}', space=vmem, size = 0x12000, scoped, tag = 'internal scratch']
  %s0 = inlined_call_operand.hbm [shape: f32[2,4,256], index: 0, kind: input, shape index: {}]
  %s1 = inlined_call_operand.vmem [shape: s32[2,1,256], index: 1, kind: input, shape index: {}]
  %s2 = inlined_call_operand.vmem [shape: f32[4,1], index: 2, kind: input, shape index: {}]
  %s3 = inlined_call_operand.vmem [shape: f32[2,1,1], index: 3, kind: output, shape index: {0}]
  %s4 = inlined_call_operand.vmem [shape: f32[2,1,1], index: 4, kind: output, shape index: {1}]
  %5 = xla_tuple %s3, %s4
  %s6 = sld [smem:[#allocation0]]
  $region57: #{tpu_custom_call.1} parent=0
    _
  %s8 = ssub.s32 1, %s6
  %s9 = scalar_select 0, %s8, %s6
  $region1: #{tpu_custom_call.1} parent=0
    #allocation2 [shape = 'u8[8192]{0}', space=vmem, size = 0x2000, scoped, tag = 'input window, operand 0']
    #allocation3 [shape = 's32[2]{0}', space=sflag, size = 0x8, scoped, tag = 'scoped memory for tpu_custom_call.1']
    %10 = vsyncpa [#allocation3], 0
    %s11 = scalar_lea.sflag [#allocation3], 1
    %12 = vsyncpa %s11, 0
    loop: start=0, step=1, limit=4
    $region2: #{tpu_custom_call.1} parent=1 // loop_pre_header
      _
    $region3: #{tpu_custom_call.1} parent=1 // loop_header
      %s14 = sphi 0, %s18
      %p15 = scmp.ge.s32.totalorder %s14, 4
      %s21 = sphi 0, %s33
      %s22 = sphi 0, %s29
      %s23 = sphi 0, %s21
      %s24 = sphi 0, %s22
      %s25 = sphi 0, %s23
      %s26 = sphi 0, %s24
      %s38 = sphi 0, %s40
      %s41 = sphi 0, %s38
      %s42 = sphi 0, %s41
      %s58 = sphi 0, %s42
      %s66 = sphi 0, %s68
      %s69 = sphi 0, %s66
      %s70 = sphi 0, %s69
      %s86 = sphi 0, %s70
      %s90 = sphi 0, %s90
      %s92 = sphi 0, %s90
      %s93 = sphi 0, %s92
      %s107 = sphi 0, %s93
      %s115 = sphi 0, %s117
      %s118 = sphi 0, %s115
      %s119 = sphi 0, %s118
      %s135 = sphi 0, %s119
      %s143 = sphi 0, %s145
      %s146 = sphi 0, %s143
      %s147 = sphi 0, %s146
      %s163 = sphi 0, %s147
    $region4: #{tpu_custom_call.1} parent=1 // loop_header_branch
      %17 = sbr.rel (%p15) target = $region8
    $region5: #{tpu_custom_call.1} parent=1 // loop_body
      %s19 = ssub.s32 %s14, 1
      %s20 = ssub.s32 %s14, 2
      %s27 = sadd.s32 1, %s22
      %p28 = scmp.ge.s32.totalorder %s27, 1
      %s29 = scalar_select %p28, 0, %s27
      %s30 = sadd.s32 1, %s21
      %s31 = scalar_select %p28, %s30, %s21
      %p32 = scmp.ge.s32.totalorder %s31, 2
      %s33 = scalar_select %p32, 0, %s31
      %s34 = ssub.s32 %s21, %s33
      %s35 = ssub.s32 %s22, %s29
      %s36 = sor.u32 %s34, %s35
      %p37 = scmp.eq.s32.totalorder %s36, 0
      %s39 = sadd.s32 %s38, 1
      %s40 = scalar_select %p37, %s38, %s39
      %p43 = pneg %p37
      %p44 = scmp.eq.s32.totalorder %s14, 1
      %p45 = por %p43, %p44
      %p46 = scmp.ne.s32.totalorder %s38, %s41
      %p47 = scmp.eq.s32.totalorder %s14, 0
      %p48 = por %p46, %p47
      %p49 = scmp.ne.s32.totalorder %s38, %s41
      %p50 = scmp.eq.s32.totalorder %s19, 1
      %p51 = por %p49, %p50
      %p52 = scmp.ne.s32.totalorder %s41, %s42
      %p53 = scmp.eq.s32.totalorder %s19, 0
      %p54 = por %p52, %p53
      %p55 = scmp.ne.s32.totalorder %s41, %s42
      %p56 = scmp.eq.s32.totalorder %s20, 1
      %p57 = por %p55, %p56
      %p59 = scmp.ne.s32.totalorder %s42, %s58
      %p60 = scmp.eq.s32.totalorder %s20, 0
      %p61 = por %p59, %p60
      %s62 = ssub.s32 %s21, %s33
      %s63 = ssub.s32 %s22, %s29
      %s64 = sor.u32 %s62, %s63
      %p65 = scmp.eq.s32.totalorder %s64, 0
      %s67 = sadd.s32 %s66, 1
      %s68 = scalar_select %p65, %s66, %s67
      %p71 = pneg %p65
      %p72 = scmp.eq.s32.totalorder %s14, 1
      %p73 = por %p71, %p72
      %p74 = scmp.ne.s32.totalorder %s66, %s69
      %p75 = scmp.eq.s32.totalorder %s14, 0
      %p76 = por %p74, %p75
      %p77 = scmp.ne.s32.totalorder %s66, %s69
      %p78 = scmp.eq.s32.totalorder %s19, 1
      %p79 = por %p77, %p78
      %p80 = scmp.ne.s32.totalorder %s69, %s70
      %p81 = scmp.eq.s32.totalorder %s19, 0
      %p82 = por %p80, %p81
      %p83 = scmp.ne.s32.totalorder %s69, %s70
      %p84 = scmp.eq.s32.totalorder %s20, 1
      %p85 = por %p83, %p84
      %p87 = scmp.ne.s32.totalorder %s70, %s86
      %p88 = scmp.eq.s32.totalorder %s20, 0
      %p89 = por %p87, %p88
      %s91 = sadd.s32 %s90, 1
      %p94 = scmp.eq.s32.totalorder %s14, 1
      %p95 = scmp.ne.s32.totalorder %s90, %s92
      %p96 = scmp.eq.s32.totalorder %s14, 0
      %p97 = por %p95, %p96
      %p98 = scmp.ne.s32.totalorder %s90, %s92
      %p99 = scmp.eq.s32.totalorder %s19, 1
      %p100 = por %p98, %p99
      %p101 = scmp.ne.s32.totalorder %s92, %s93
      %p102 = scmp.eq.s32.totalorder %s19, 0
      %p103 = por %p101, %p102
      %p104 = scmp.ne.s32.totalorder %s92, %s93
      %p105 = scmp.eq.s32.totalorder %s20, 1
      %p106 = por %p104, %p105
      %p108 = scmp.ne.s32.totalorder %s93, %s107
      %p109 = scmp.eq.s32.totalorder %s20, 0
      %p110 = por %p108, %p109
      %s111 = sadd.s32 %s21, %s22
      %s112 = sadd.s32 %s33, %s29
      %s113 = ssub.s32 %s111, %s112
      %p114 = scmp.eq.s32.totalorder %s113, 0
      %s116 = sadd.s32 %s115, 1
      %s117 = scalar_select %p114, %s115, %s116
      %p120 = pneg %p114
      %p121 = scmp.eq.s32.totalorder %s14, 1
      %p122 = por %p120, %p121
      %p123 = scmp.ne.s32.totalorder %s115, %s118
      %p124 = scmp.eq.s32.totalorder %s14, 0
      %p125 = por %p123, %p124
      %p126 = scmp.ne.s32.totalorder %s115, %s118
      %p127 = scmp.eq.s32.totalorder %s19, 1
      %p128 = por %p126, %p127
      %p129 = scmp.ne.s32.totalorder %s118, %s119
      %p130 = scmp.eq.s32.totalorder %s19, 0
      %p131 = por %p129, %p130
      %p132 = scmp.ne.s32.totalorder %s118, %s119
      %p133 = scmp.eq.s32.totalorder %s20, 1
      %p134 = por %p132, %p133
      %p136 = scmp.ne.s32.totalorder %s119, %s135
      %p137 = scmp.eq.s32.totalorder %s20, 0
      %p138 = por %p136, %p137
      %s139 = sadd.s32 %s21, %s22
      %s140 = sadd.s32 %s33, %s29
      %s141 = ssub.s32 %s139, %s140
      %p142 = scmp.eq.s32.totalorder %s141, 0
      %s144 = sadd.s32 %s143, 1
      %s145 = scalar_select %p142, %s143, %s144
      %p148 = pneg %p142
      %p149 = scmp.eq.s32.totalorder %s14, 1
      %p150 = por %p148, %p149
      %p151 = scmp.ne.s32.totalorder %s143, %s146
      %p152 = scmp.eq.s32.totalorder %s14, 0
      %p153 = por %p151, %p152
      %p154 = scmp.ne.s32.totalorder %s143, %s146
      %p155 = scmp.eq.s32.totalorder %s19, 1
      %p156 = por %p154, %p155
      %p157 = scmp.ne.s32.totalorder %s146, %s147
      %p158 = scmp.eq.s32.totalorder %s19, 0
      %p159 = por %p157, %p158
      %p160 = scmp.ne.s32.totalorder %s146, %s147
      %p161 = scmp.eq.s32.totalorder %s20, 1
      %p162 = por %p160, %p161
      %p164 = scmp.ne.s32.totalorder %s147, %s163
      %p165 = scmp.eq.s32.totalorder %s20, 0
      %p166 = por %p164, %p165
      %p167 = scmp.le.s32.totalorder 1, %s14
      %p168 = scmp.lt.s32.totalorder %s14, 3
      %p169 = pnand %p167, %p168
      %p170 = pneg %p169
      // Predicated region
      $region9: #{tpu_custom_call.1} parent=5 // pred_check
        _
      $region10: #{tpu_custom_call.1} parent=5 // pred_check_branch
        %172 = sbr.rel (%p169) target = $region12
      $region11: #{tpu_custom_call.1} parent=5 // pred_region
        %s173 = ssub.s32 %s14, 1
        // Predicated region
        $region13: #{tpu_custom_call.1} parent=11 // pred_check
          %p174 = pneg %p103
        $region14: #{tpu_custom_call.1} parent=11 // pred_check_branch
          %176 = sbr.rel (%p174) target = $region16
        $region15: #{tpu_custom_call.1} parent=11 // pred_region
          _
        $region16: #{tpu_custom_call.1} parent=11 // pred_fallthru
          _
      $region12: #{tpu_custom_call.1} parent=5 // pred_fallthru
        _
      %p177 = scmp.lt.s32.totalorder %s14, 2
      // Predicated region
      $region17: #{tpu_custom_call.1} parent=5 // pred_check
        %p178 = pneg %p177
      $region18: #{tpu_custom_call.1} parent=5 // pred_check_branch
        %180 = sbr.rel (%p178) target = $region20
      $region19: #{tpu_custom_call.1} parent=5 // pred_region
        // Predicated region
        $region21: #{tpu_custom_call.1} parent=19 // pred_check
          %p181 = pneg %p48
        $region22: #{tpu_custom_call.1} parent=19 // pred_check_branch
          %183 = sbr.rel (%p181) target = $region24
        $region23: #{tpu_custom_call.1} parent=19 // pred_region
          %s184 = sand.u32 %s38, 1
          %s185 = scalar_lea.sflag [#allocation3], %s184
          %s186 = sand.u32 %s38, 1
          %s187 = smul.addr %s186, 8
          %s188 = scalar_lea.vmem [#allocation2], %s187
          %s189 = smul.u32 2, %s22
          %s191 = ssub.s32 128, 128
          %192 = vsyncadd %s185, %s191
          %s193 = smul.addr %s21, 2
          %s194 = sadd.s32 %s189, %s193
          %s195 = smul.addr %s194, 64
          %s196 = scalar_lea.hbm %s0, %s195
          %s198 = sshll.u32 %s188, 4
          %s199 = int_to_ptr.vmem [resolvable:$true] %s198
          %201 = dma.hbm_to_vmem [thread:$0]  %s196, 128, %s199, %s185
        $region24: #{tpu_custom_call.1} parent=19 // pred_fallthru
          _
        // Predicated region
        $region25: #{tpu_custom_call.1} parent=19 // pred_check
          %p202 = pneg %p76
        $region26: #{tpu_custom_call.1} parent=19 // pred_check_branch
          %204 = sbr.rel (%p202) target = $region28
        $region27: #{tpu_custom_call.1} parent=19 // pred_region
          %s205 = smul.u32 2, %s22
          %p206 = scmp.lt.s32.totalorder %s21, 1
          %s207 = scalar_select %p206, %s21, 1
          %p208 = scmp.lt.s32.totalorder %s205, 1
          %s209 = scalar_select %p208, %s205, 1
          %s210 = smul.addr %s207, 2
          %s211 = sadd.s32 %s209, %s210
          %s212 = scalar_lea.vmem %s1, %s211
          %s213 = smul.u32 2, %s22
        $region28: #{tpu_custom_call.1} parent=19 // pred_fallthru
          _
      $region20: #{tpu_custom_call.1} parent=5 // pred_fallthru
        _
      %p214 = scmp.le.s32.totalorder 1, %s14
      %p215 = scmp.lt.s32.totalorder %s14, 3
      %p216 = pnand %p214, %p215
      %p217 = pneg %p216
      // Predicated region
      $region29: #{tpu_custom_call.1} parent=5 // pred_check
        _
      $region30: #{tpu_custom_call.1} parent=5 // pred_check_branch
        %219 = sbr.rel (%p216) target = $region32
      $region31: #{tpu_custom_call.1} parent=5 // pred_region
        %s220 = ssub.s32 %s14, 1
        %s221 = sand.u32 %s41, 1
        %s222 = scalar_lea.sflag [#allocation3], %s221
        %s223 = sand.u32 %s41, 1
        %s224 = smul.addr %s223, 8
        %s225 = scalar_lea.vmem [#allocation2], %s224
        // Predicated region
        $region33: #{tpu_custom_call.1} parent=31 // pred_check
          %p226 = pneg %p54
        $region34: #{tpu_custom_call.1} parent=31 // pred_check_branch
          %228 = sbr.rel (%p226) target = $region36
        $region35: #{tpu_custom_call.1} parent=31 // pred_region
          %229 = dma.done %s222, 128
        $region36: #{tpu_custom_call.1} parent=31 // pred_fallthru
          _
        %s230 = sand.u32 %s41, 1
        %s231 = scalar_lea.sflag [#allocation3], %s230
        %s232 = sand.u32 %s41, 1
        %s233 = smul.addr %s232, 8
        %s234 = scalar_lea.vmem [#allocation2], %s233
        %p235 = pneg %p54
        %p236 = pneg %p51
        %s237 = smul.u32 2, %s24
        %p238 = scmp.lt.s32.totalorder %s23, 1
        %s239 = scalar_select %p238, %s23, 1
        %p240 = scmp.lt.s32.totalorder %s237, 1
        %s241 = scalar_select %p240, %s237, 1
        %s242 = smul.addr %s239, 2
        %s243 = sadd.s32 %s241, %s242
        %s244 = scalar_lea.vmem %s1, %s243
        %p245 = pneg %p82
        %p246 = pneg %p79
        %p247 = pneg %p103
        %p248 = pneg %p100
        %p249 = pneg %p131
        %p250 = pneg %p128
        %s251 = sadd.s32 %s23, %s24
        %p252 = scmp.lt.s32.totalorder %s251, 1
        %s253 = scalar_select %p252, %s251, 1
        %s254 = scalar_lea.vmem %s3, %s253
        %p255 = pneg %p159
        %p256 = pneg %p156
        %s257 = sadd.s32 %s23, %s24
        %p258 = scmp.lt.s32.totalorder %s257, 1
        %s259 = scalar_select %p258, %s257, 1
        %s260 = scalar_lea.vmem %s4, %s259
        %s261 = smul.u32 2, %s24
        %s262 = smul.u32 2, %s24
        %p263 = scmp.lt.s32.totalorder %s23, 1
        %s264 = scalar_select %p263, %s23, 1
        %p265 = scmp.lt.s32.totalorder %s262, 1
        %s266 = scalar_select %p265, %s262, 1
        %s267 = smul.addr %s264, 2
        %s268 = sadd.s32 %s266, %s267
        %s269 = scalar_lea.vmem %s1, %s268
        %s270 = smul.u32 2, %s24
        %s271 = sadd.s32 %s23, %s24
        %p272 = scmp.lt.s32.totalorder %s271, 1
        %s273 = scalar_select %p272, %s271, 1
        %s274 = scalar_lea.vmem %s3, %s273
        %s275 = sadd.s32 %s23, %s24
        %s276 = sadd.s32 %s23, %s24
        %p277 = scmp.lt.s32.totalorder %s276, 1
        %s278 = scalar_select %p277, %s276, 1
        %s279 = scalar_lea.vmem %s4, %s278
        %s280 = sadd.s32 %s23, %s24
        %v281 = vld [vmem:[%s225] sm:$0xff]
        %v282 = vld [vmem:[%s269] sm:$0x3]
        %v283 = vld [vmem:[%s2] sm:$0xf]
        %v285 = vcombine.high %v281, %v281
        %vm287 = vcmask 1043456
        %v288 = vsel %vm287, %v281, -inf
        %v289 = vrot.slane %v288, 4
        %v290 = vmax.f32 %v288, %v289
        %v291 = vrot.slane %v290, 2
        %v292 = vmax.f32 %v290, %v291
        %v293 = vrot.slane %v292, 1
        %v294 = vmax.f32 %v292, %v293
        %v295 = vsel %vm287, %v285, -inf
        %v296 = vrot.slane %v295, 4
        %v297 = vmax.f32 %v295, %v296
        %v298 = vrot.slane %v297, 2
        %v299 = vmax.f32 %v297, %v298
        %v300 = vrot.slane %v299, 1
        %v301 = vmax.f32 %v299, %v300
        %v304 = vcombine.low %v294, %v301
        %v306 = vsub.f32 %v281, %v304
        %v307 = vmul.f32 %v306, 1.442695
        %v308 = vpow.pop %v307
        %v310 = vcombine.high %v308, %v308
        %v312 = vsel %vm287, %v308, 0.0
        %v313 = vrot.slane %v312, 4
        %v314 = vadd.f32 %v312, %v313
        %v315 = vrot.slane %v314, 2
        %v316 = vadd.f32 %v314, %v315
        %v317 = vrot.slane %v316, 1
        %v318 = vadd.f32 %v316, %v317
        %v319 = vsel %vm287, %v310, 0.0
        %v320 = vrot.slane %v319, 4
        %v321 = vadd.f32 %v319, %v320
        %v322 = vrot.slane %v321, 2
        %v323 = vadd.f32 %v321, %v322
        %v324 = vrot.slane %v323, 1
        %v325 = vadd.f32 %v323, %v324
        %v326 = vlog2.pop %v318
        %v327 = vmul.f32 %v326, 0.6931472
        %v328 = vlog2.pop %v325
        %v329 = vmul.f32 %v328, 0.6931472
        %v330 = vlaneseq
        %v331 = vshrl.u32 %v330, 7
        %v332 = vlaneseq
        %v333 = vshrl.u32 %v332, 7
        %v334 = vsub.s32 0, %v333
        %v335 = vrot.slane %v282, %v334
        %v336 = vlaneseq
        %v337 = vshrl.u32 %v336, 7
        %v338 = vsub.s32 1, %v337
        %v339 = vrot.slane %v282, %v338
        %vm340 = vcmp.eq.s32.totalorder %v331, %v335
        %vm341 = vcmp.eq.s32.totalorder %v331, %v339
        %v342 = vsel %vm340, 1, 0
        %v343 = vsel %vm341, 1, 0
        %v344 = vcvt.s32.f32 %v342
        %v345 = vcvt.s32.f32 %v343
        %v348 = vcombine.low %v344, %v345
        %v350 = vmul.f32 %v306, %v348
        %v352 = vcombine.high %v350, %v350
        %v354 = vsel %vm287, %v350, 0.0
        %v355 = vrot.slane %v354, 4
        %v356 = vadd.f32 %v354, %v355
        %v357 = vrot.slane %v356, 2
        %v358 = vadd.f32 %v356, %v357
        %v359 = vrot.slane %v358, 1
        %v360 = vadd.f32 %v358, %v359
        %v361 = vsel %vm287, %v352, 0.0
        %v362 = vrot.slane %v361, 4
        %v363 = vadd.f32 %v361, %v362
        %v364 = vrot.slane %v363, 2
        %v365 = vadd.f32 %v363, %v364
        %v366 = vrot.slane %v365, 1
        %v367 = vadd.f32 %v365, %v366
        %v368 = vmul.f32 %v308, %v348
        %v370 = vcombine.high %v368, %v368
        %v372 = vsel %vm287, %v368, 0.0
        %v373 = vrot.slane %v372, 4
        %v374 = vadd.f32 %v372, %v373
        %v375 = vrot.slane %v374, 2
        %v376 = vadd.f32 %v374, %v375
        %v377 = vrot.slane %v376, 1
        %v378 = vadd.f32 %v376, %v377
        %v379 = vsel %vm287, %v370, 0.0
        %v380 = vrot.slane %v379, 4
        %v381 = vadd.f32 %v379, %v380
        %v382 = vrot.slane %v381, 2
        %v383 = vadd.f32 %v381, %v382
        %v384 = vrot.slane %v383, 1
        %v385 = vadd.f32 %v383, %v384
        %387 = vset.pattern.permute.xlu0 0
        %388 = vperm.xlu0 %387, %v283
        %v389 = vpop.permute.xlu0 %388
        %v391 = vmul.f32 %v389, %v344
        %v392 = vmul.f32 %v389, %v345
        %v393 = vsel %vm287, %v391, 0.0
        %v394 = vrot.slane %v393, 4
        %v395 = vadd.f32 %v393, %v394
        %v396 = vrot.slane %v395, 2
        %v397 = vadd.f32 %v395, %v396
        %v398 = vrot.slane %v397, 1
        %v399 = vadd.f32 %v397, %v398
        %v400 = vsel %vm287, %v392, 0.0
        %v401 = vrot.slane %v400, 4
        %v402 = vadd.f32 %v400, %v401
        %v403 = vrot.slane %v402, 2
        %v404 = vadd.f32 %v402, %v403
        %v405 = vrot.slane %v404, 1
        %v406 = vadd.f32 %v404, %v405
        %v407 = vsub.f32 %v360, %v327
        %v408 = vsub.f32 %v367, %v329
        %v409 = vsub.f32 0.0, %v399
        %v410 = vsub.f32 0.0, %v406
        %v411 = vmul.f32 %v409, %v407
        %v412 = vmul.f32 %v410, %v408
        %v413 = vsub.f32 %v318, %v378
        %v414 = vsub.f32 %v325, %v385
        %v415 = vmax.f32 %v413, 0.0
        %v416 = vmax.f32 %v414, 0.0
        %v417 = vrcp.pop %v318
        %v418 = vmul.f32 %v415, %v417
        %v419 = vrcp.pop %v325
        %v420 = vmul.f32 %v416, %v419
        %v421 = vmul.f32 %v418, %v418
        %v422 = vmul.f32 %v420, %v420
        %v423 = vlaneseq
        %v424 = vand.u32 %v423, 127
        %v425 = vadd.s32 %v424, 128
        %s426 = smul.u32 %s24, 256
        %v427 = vstv %s426
        %v428 = vadd.s32 %v424, %v427
        %v429 = vadd.s32 %v425, %v427
        %vm430 = vcmp.lt.s32.totalorder %v428, 256
        %vm431 = vcmp.lt.s32.totalorder %v429, 256
        %vm432 = vcmp.ne.s32.totalorder %v282, 4294967196
        %v433 = vsel %vm432, 1, 0
        %v434 = vlaneseq
        %v435 = vshrl.u32 %v434, 7
        %v436 = vsub.s32 0, %v435
        %v437 = vrot.slane %v433, %v436
        %v438 = vlaneseq
        %v439 = vshrl.u32 %v438, 7
        %v440 = vsub.s32 1, %v439
        %v441 = vrot.slane %v433, %v440
        %vm442 = vcmp.ne.s32.totalorder %v437, 0
        %vm443 = vcmp.ne.s32.totalorder %v441, 0
        %vm444 = vmand %vm430, %vm442
        %vm445 = vmand %vm431, %vm443
        %v446 = vmul.f32 %v421, %v411
        %v447 = vmul.f32 %v422, %v412
        %v448 = vsel %vm444, %v446, 0.0
        %v449 = vsel %vm445, %v447, 0.0
        %vm450 = vcmask 1040384
        %v451 = vsel %vm450, %v448, 0.0
        %v452 = vsel %vm450, %v449, 0.0
        %v453 = vadd.f32 %v451, %v452
        %454 = vadd.xlane.f32.xlu0 %v453
        %v455 = vpop.xlane.xlu0 %454
        %v456 = vrot.slane %v455, 4
        %v457 = vadd.f32 %v455, %v456
        %v458 = vrot.slane %v457, 2
        %v459 = vadd.f32 %v457, %v458
        %v460 = vrot.slane %v459, 1
        %v461 = vadd.f32 %v459, %v460
        %s462 = vtos %v461
        %v463 = vstv %s462
        %vm464 = vcmask 0
        %465 = vst.msk [vmem:[%s274] sm:$0x1] %vm464, %v463
        %v466 = vsel %vm444, 1, 0
        %v467 = vsel %vm445, 1, 0
        %v468 = vcvt.s32.f32 %v466
        %v469 = vcvt.s32.f32 %v467
        %v470 = vsel %vm450, %v468, 0.0
        %v471 = vsel %vm450, %v469, 0.0
        %v472 = vadd.f32 %v470, %v471
        %473 = vadd.xlane.f32.xlu0 %v472
        %v474 = vpop.xlane.xlu0 %473
        %v475 = vrot.slane %v474, 4
        %v476 = vadd.f32 %v474, %v475
        %v477 = vrot.slane %v476, 2
        %v478 = vadd.f32 %v476, %v477
        %v479 = vrot.slane %v478, 1
        %v480 = vadd.f32 %v478, %v479
        %s481 = vtos %v480
        %v482 = vstv %s481
        %483 = vst.msk [vmem:[%s279] sm:$0x1] %vm464, %v482
        %s484 = sadd.s32 %s23, %s24
        %p485 = scmp.lt.s32.totalorder %s484, 1
        %s486 = scalar_select %p485, %s484, 1
        %s487 = scalar_lea.vmem %s3, %s486
        %s488 = sadd.s32 %s23, %s24
        %p489 = scmp.lt.s32.totalorder %s488, 1
        %s490 = scalar_select %p489, %s488, 1
        %s491 = scalar_lea.vmem %s4, %s490
        // Predicated region
        $region37: #{tpu_custom_call.1} parent=31 // pred_check
          %p492 = pneg %p128
        $region38: #{tpu_custom_call.1} parent=31 // pred_check_branch
          %494 = sbr.rel (%p492) target = $region40
        $region39: #{tpu_custom_call.1} parent=31 // pred_region
          %s495 = sadd.s32 %s23, %s24
        $region40: #{tpu_custom_call.1} parent=31 // pred_fallthru
          _
        // Predicated region
        $region41: #{tpu_custom_call.1} parent=31 // pred_check
          %p496 = pneg %p156
        $region42: #{tpu_custom_call.1} parent=31 // pred_check_branch
          %498 = sbr.rel (%p496) target = $region44
        $region43: #{tpu_custom_call.1} parent=31 // pred_region
          %s499 = sadd.s32 %s23, %s24
        $region44: #{tpu_custom_call.1} parent=31 // pred_fallthru
          _
      $region32: #{tpu_custom_call.1} parent=5 // pred_fallthru
        _
      %p500 = scmp.le.s32.totalorder 2, %s14
      // Predicated region
      $region45: #{tpu_custom_call.1} parent=5 // pred_check
        %p501 = pneg %p500
      $region46: #{tpu_custom_call.1} parent=5 // pred_check_branch
        %503 = sbr.rel (%p501) target = $region48
      $region47: #{tpu_custom_call.1} parent=5 // pred_region
        %s504 = ssub.s32 %s14, 2
        // Predicated region
        $region49: #{tpu_custom_call.1} parent=47 // pred_check
          %p505 = pneg %p134
        $region50: #{tpu_custom_call.1} parent=47 // pred_check_branch
          %507 = sbr.rel (%p505) target = $region52
        $region51: #{tpu_custom_call.1} parent=47 // pred_region
          %s508 = sadd.s32 %s25, %s26
          %p509 = scmp.lt.s32.totalorder %s508, 1
          %s510 = scalar_select %p509, %s508, 1
          %s511 = scalar_lea.vmem %s3, %s510
        $region52: #{tpu_custom_call.1} parent=47 // pred_fallthru
          _
        // Predicated region
        $region53: #{tpu_custom_call.1} parent=47 // pred_check
          %p512 = pneg %p162
        $region54: #{tpu_custom_call.1} parent=47 // pred_check_branch
          %514 = sbr.rel (%p512) target = $region56
        $region55: #{tpu_custom_call.1} parent=47 // pred_region
          %s515 = sadd.s32 %s25, %s26
          %p516 = scmp.lt.s32.totalorder %s515, 1
          %s517 = scalar_select %p516, %s515, 1
          %s518 = scalar_lea.vmem %s4, %s517
        $region56: #{tpu_custom_call.1} parent=47 // pred_fallthru
          _
      $region48: #{tpu_custom_call.1} parent=5 // pred_fallthru
        _
    $region6: #{tpu_custom_call.1} parent=1 // loop_footer
      %s18 = sadd.s32 1, %s14
    $region7: #{tpu_custom_call.1} parent=1 // loop_footer_branch
      %13 = sbr.rel target = $region3
    $region8: #{tpu_custom_call.1} parent=1 // loop_exit
      _
    %519 = vsyncpa [#allocation3], 1
    %s520 = scalar_lea.sflag [#allocation3], 1
    %521 = vsyncpa %s520, 1

</llo_original>
